<compile_context>
chip_gen: v7x
topology: tpu7x:2x2x1
jax: 0.10.0
libtpu: 0.0.40
codegen_flags: <defaults>
</compile_context>

<pallas_src>
import functools

import jax
import jax.numpy as jnp
from jax.experimental import pallas as pl
from jax.experimental.pallas import tpu as pltpu

LN_EPS = 1e-5  # nn.LayerNorm default


def _prenorm_kernel(x_ref, g_ref, b_ref, w_ref, wb_ref, o_ref):
    # x_ref: (tm, D) tile of flattened tokens
    # w_ref: (D, tn) tile of the fused Linear weight (already in MXU dtype)
    # o_ref: (tm, tn) output tile

    # --- LayerNorm over the last axis, f32 statistics (PyTorch biased var) ---
    x = x_ref[...].astype(jnp.float32)
    mean = jnp.mean(x, axis=-1, keepdims=True)
    centered = x - mean
    var = jnp.mean(centered * centered, axis=-1, keepdims=True)
    inv = jax.lax.rsqrt(var + LN_EPS)          # EUP

    # Load / cast the affine params once per grid step.
    g = g_ref[...].astype(jnp.float32)
    b = b_ref[...].astype(jnp.float32)
    y = (centered * inv) * g + b

    # --- fn: Linear(dim -> H) tile on the MXU: bf16 operands, f32 accumulate ---
    y_mxu = y.astype(w_ref.dtype)
    acc = jnp.dot(y_mxu, w_ref[...], preferred_element_type=jnp.float32)
    acc = acc + wb_ref[...].astype(jnp.float32)

    o_ref[...] = acc.astype(o_ref.dtype)


@functools.partial(jax.jit, static_argnames=("tm", "tn", "mxu_dtype"))
def prenorm_forward(x, gamma, beta, w, wb, *, tm=256, tn=512,
                    mxu_dtype=jnp.bfloat16):
    """x: (B, N, D) -> fn(LayerNorm(x)): (B, N, H).

    tm: token-tile rows (multiple of 8; 128+ recommended, 256+ on v6e/v7x).
    tn: output-feature tile (multiple of 128).
    Both are clamped to the actual array extents for small inputs.
    """
    B, N, D = x.shape
    H = w.shape[1]
    M = B * N
    x2 = x.reshape(M, D)

    tm_eff = min(tm, M)          # == M (full extent) when M < tm
    tn_eff = min(tn, H)          # == H (full extent) when H < tn

    # Weight cast to MXU dtype once, outside the grid loop: halves its
    # HBM->VMEM traffic and VMEM block size.
    w_mxu = w.astype(mxu_dtype)

    grid = (pl.cdiv(M, tm_eff), pl.cdiv(H, tn_eff))

    out2 = pl.pallas_call(
        _prenorm_kernel,
        out_shape=jax.ShapeDtypeStruct((M, H), x.dtype),
        grid_spec=pltpu.PrefetchScalarGridSpec(
            num_scalar_prefetch=0,
            grid=grid,
            in_specs=[
                # x tile: constant across the inner H axis -> re-DMA is skipped.
                pl.BlockSpec((tm_eff, D), lambda i, j: (i, 0)),
                # gamma/beta: grid-invariant -> single-buffered.
                pl.BlockSpec((1, D), lambda i, j: (0, 0),
                             pipeline_mode=pl.Buffered(1)),
                pl.BlockSpec((1, D), lambda i, j: (0, 0),
                             pipeline_mode=pl.Buffered(1)),
                # weight / bias tiles vary along j -> keep default double buffer.
                pl.BlockSpec((D, tn_eff), lambda i, j: (0, j)),
                pl.BlockSpec((1, tn_eff), lambda i, j: (0, j)),
            ],
            out_specs=pl.BlockSpec((tm_eff, tn_eff), lambda i, j: (i, j)),
        ),
        compiler_params=pltpu.CompilerParams(
            # No reduction axis: both grid axes are independent, so v7x can
            # shard them across its two TensorCores.
            dimension_semantics=("parallel", "parallel")),
    )(x2, gamma, beta, w_mxu, wb)

    return out2.reshape(B, N, H)


def reference(x, gamma, beta, w, wb):
    xf = x.astype(jnp.float32)
    mean = jnp.mean(xf, axis=-1, keepdims=True)
    var = jnp.mean((xf - mean) ** 2, axis=-1, keepdims=True)
    y = (xf - mean) / jnp.sqrt(var + LN_EPS) * gamma[0] + beta[0]
    return (y @ w + wb[0]).astype(x.dtype)


if __name__ == "__main__":
    key = jax.random.PRNGKey(0)
    # Small but lane-dense (multiples of 128 on the feature axes) so the demo
    # exercises unmasked, full-width stores.
    B, N, D, H = 2, 8, 128, 256

    kx, kw, kb = jax.random.split(key, 3)
    x = jax.random.normal(kx, (B, N, D), dtype=jnp.float32)

    # nn.LayerNorm init: gamma=1, beta=0; Linear: small random weights.
    gamma = jnp.ones((1, D), dtype=jnp.float32)
    beta = jnp.zeros((1, D), dtype=jnp.float32)
    w = jax.random.normal(kw, (D, H), dtype=jnp.float32) * 0.02
    wb = jax.random.normal(kb, (1, H), dtype=jnp.float32) * 0.02

    out = prenorm_forward(x, gamma, beta, w, wb)
    out = jax.block_until_ready(out)

    ref = reference(x, gamma, beta, w, wb)
    assert out.shape == (B, N, H)
    # bf16 MXU operands with f32 accumulation: compare against the pure-f32
    # reference with a correspondingly loosened tolerance.
    assert jnp.allclose(out, ref, atol=3e-2, rtol=3e-2), "mismatch vs reference"

    print("KERNEL_OK")
</pallas_src>

<mosaic_0001>
module attributes {stable_mosaic.version = 11 : i64} {
  func.func @_prenorm_kernel(%arg0: i32, %arg1: i32, %arg2: memref<16x128xf32, #tpu.memory_space<vmem>>, %arg3: memref<1x128xf32, #tpu.memory_space<vmem>>, %arg4: memref<1x128xf32, #tpu.memory_space<vmem>>, %arg5: memref<128x256xbf16, #tpu.memory_space<vmem>>, %arg6: memref<1x256xf32, #tpu.memory_space<vmem>>, %arg7: memref<16x256xf32, #tpu.memory_space<vmem>>) attributes {dimension_semantics = [#tpu.dimension_semantics<parallel>, #tpu.dimension_semantics<parallel>], iteration_bounds = array<i64: 1, 1>, scalar_prefetch = 0 : i64, scratch_operands = 0 : i64, tpu.core_type = #tpu.core_type<tc>, window_params = [{transform_indices = @transform_0, window_bounds = array<i64: 16, 128>}, {pipeline_mode = #tpu.pipeline_mode<synchronous>, transform_indices = @transform_1, window_bounds = array<i64: 1, 128>}, {pipeline_mode = #tpu.pipeline_mode<synchronous>, transform_indices = @transform_2, window_bounds = array<i64: 1, 128>}, {transform_indices = @transform_3, window_bounds = array<i64: 128, 256>}, {transform_indices = @transform_4, window_bounds = array<i64: 1, 256>}, {transform_indices = @transform_5, window_bounds = array<i64: 16, 256>}]} {
    %c0 = arith.constant 0 : index
    %c0_0 = arith.constant 0 : index
    %0 = vector.load %arg2[%c0, %c0_0] : memref<16x128xf32, #tpu.memory_space<vmem>>, vector<16x128xf32>
    %cst = arith.constant dense<0.000000e+00> : vector<16xf32>
    %1 = vector.multi_reduction <add>, %0, %cst [1] : vector<16x128xf32> to vector<16xf32>
    %2 = vector.shape_cast %1 : vector<16xf32> to vector<16x1xf32>
    %cst_1 = arith.constant 1.280000e+02 : f32
    %3 = vector.broadcast %cst_1 : f32 to vector<16x1xf32>
    %4 = arith.divf %2, %3 : vector<16x1xf32>
    %5 = vector.broadcast %4 : vector<16x1xf32> to vector<16x128xf32>
    %6 = arith.subf %0, %5 : vector<16x128xf32>
    %7 = arith.mulf %6, %6 : vector<16x128xf32>
    %cst_2 = arith.constant dense<0.000000e+00> : vector<16xf32>
    %8 = vector.multi_reduction <add>, %7, %cst_2 [1] : vector<16x128xf32> to vector<16xf32>
    %9 = vector.shape_cast %8 : vector<16xf32> to vector<16x1xf32>
    %cst_3 = arith.constant 1.280000e+02 : f32
    %10 = vector.broadcast %cst_3 : f32 to vector<16x1xf32>
    %11 = arith.divf %9, %10 : vector<16x1xf32>
    %cst_4 = arith.constant 9.99999974E-6 : f32
    %12 = vector.broadcast %cst_4 : f32 to vector<16x1xf32>
    %13 = arith.addf %11, %12 : vector<16x1xf32>
    %14 = math.rsqrt %13 : vector<16x1xf32>
    %c0_5 = arith.constant 0 : index
    %c0_6 = arith.constant 0 : index
    %15 = vector.load %arg3[%c0_5, %c0_6] : memref<1x128xf32, #tpu.memory_space<vmem>>, vector<1x128xf32>
    %c0_7 = arith.constant 0 : index
    %c0_8 = arith.constant 0 : index
    %16 = vector.load %arg4[%c0_7, %c0_8] : memref<1x128xf32, #tpu.memory_space<vmem>>, vector<1x128xf32>
    %17 = vector.broadcast %14 : vector<16x1xf32> to vector<16x128xf32>
    %18 = arith.mulf %6, %17 : vector<16x128xf32>
    %19 = vector.broadcast %15 : vector<1x128xf32> to vector<16x128xf32>
    %20 = arith.mulf %18, %19 : vector<16x128xf32>
    %21 = vector.broadcast %16 : vector<1x128xf32> to vector<16x128xf32>
    %22 = arith.addf %20, %21 : vector<16x128xf32>
    %23 = arith.truncf %22 : vector<16x128xf32> to vector<16x128xbf16>
    %c0_9 = arith.constant 0 : index
    %c0_10 = arith.constant 0 : index
    %24 = vector.load %arg5[%c0_9, %c0_10] : memref<128x256xbf16, #tpu.memory_space<vmem>>, vector<128x256xbf16>
    %cst_11 = arith.constant dense<0.000000e+00> : vector<16x256xf32>
    %25 = tpu.matmul %23, %24, %cst_11 {dimension_numbers = #tpu.dot_dimension_numbers<[1], [0], [0], [1], [0, 0, 1, 1], [], []>} : vector<16x128xbf16>, vector<128x256xbf16>, vector<16x256xf32> -> vector<16x256xf32>
    %c0_12 = arith.constant 0 : index
    %c0_13 = arith.constant 0 : index
    %26 = vector.load %arg6[%c0_12, %c0_13] : memref<1x256xf32, #tpu.memory_space<vmem>>, vector<1x256xf32>
    %27 = vector.broadcast %26 : vector<1x256xf32> to vector<16x256xf32>
    %28 = arith.addf %25, %27 : vector<16x256xf32>
    %c0_14 = arith.constant 0 : index
    %c0_15 = arith.constant 0 : index
    %29 = vector.load %arg7[%c0_14, %c0_15] : memref<16x256xf32, #tpu.memory_space<vmem>>, vector<16x256xf32>
    tpu.vector_store %arg7[%c0_14, %c0_15], %28 {strides = array<i32>} : memref<16x256xf32, #tpu.memory_space<vmem>>, vector<16x256xf32>,
    return
  }
  func.func @transform_0(%arg0: i32, %arg1: i32) -> (i32, i32) {
    %c0_i32 = arith.constant 0 : i32
    %c0_i32_0 = arith.constant 0 : i32
    return %arg0, %c0_i32 : i32, i32
  }
  func.func @transform_1(%arg0: i32, %arg1: i32) -> (i32, i32) {
    %c0_i32 = arith.constant 0 : i32
    %c0_i32_0 = arith.constant 0 : i32
    %c0_i32_1 = arith.constant 0 : i32
    return %c0_i32, %c0_i32_0 : i32, i32
  }
  func.func @transform_2(%arg0: i32, %arg1: i32) -> (i32, i32) {
    %c0_i32 = arith.constant 0 : i32
    %c0_i32_0 = arith.constant 0 : i32
    %c0_i32_1 = arith.constant 0 : i32
    return %c0_i32, %c0_i32_0 : i32, i32
  }
  func.func @transform_3(%arg0: i32, %arg1: i32) -> (i32, i32) {
    %c0_i32 = arith.constant 0 : i32
    %c0_i32_0 = arith.constant 0 : i32
    return %c0_i32, %arg1 : i32, i32
  }
  func.func @transform_4(%arg0: i32, %arg1: i32) -> (i32, i32) {
    %c0_i32 = arith.constant 0 : i32
    %c0_i32_0 = arith.constant 0 : i32
    return %c0_i32, %arg1 : i32, i32
  }
  func.func @transform_5(%arg0: i32, %arg1: i32) -> (i32, i32) {
    %c0_i32 = arith.constant 0 : i32
    return %arg0, %arg1 : i32, i32
  }
}

</mosaic_0001>

<llo_original>
// kernel: prenorm_forward.1
$region0: #{prenorm_forward.1}
  #allocation0 [shape = 'u32[]', space=smem, size = 0x4, offset = 0x4, fixed_abs, tag = 'smem constant byte address 0x4 - core index']
  #allocation1 [shape = 'u32[144,128]{1,0:T(1,128)}', space=vmem, size = 0x12000, scoped, tag = 'internal scratch']
  %s0 = inlined_call_operand.vmem [shape: f32[16,128], index: 0, kind: input, shape index: {}]
  %s1 = inlined_call_operand.vmem [shape: f32[1,128], index: 1, kind: input, shape index: {}]
  %s2 = inlined_call_operand.vmem [shape: f32[1,128], index: 2, kind: input, shape index: {}]
  %s3 = inlined_call_operand.vmem [shape: bf16[128,256], index: 3, kind: input, shape index: {}]
  %s4 = inlined_call_operand.vmem [shape: f32[1,256], index: 4, kind: input, shape index: {}]
  %s5 = inlined_call_operand.hbm [shape: f32[16,256], index: 5, kind: output, shape index: {}]
  %s6 = sld [smem:[#allocation0]]
  $region30: #{prenorm_forward.1} parent=0
    _
  %s8 = ssub.s32 1, %s6
  %s9 = scalar_select 0, %s8, %s6
  $region1: #{prenorm_forward.1} parent=0
    #allocation2 [shape = 'u8[16384]{0}', space=vmem, size = 0x4000, scoped, tag = 'output window, operand 0, single buffered']
    #allocation3 [shape = 's32[1]{0}', space=sflag, size = 0x4, scoped, tag = 'scoped memory for prenorm_forward.1']
    %10 = vsyncpa [#allocation3], 0
    // Predicated region
    $region2: #{prenorm_forward.1} parent=1 // pred_check
      _
    $region3: #{prenorm_forward.1} parent=1 // pred_check_branch
      %12 = sbr.rel (0) target = $region5
    $region4: #{prenorm_forward.1} parent=1 // pred_region
      _
    $region5: #{prenorm_forward.1} parent=1 // pred_fallthru
      _
    // Predicated region
    $region6: #{prenorm_forward.1} parent=1 // pred_check
      _
    $region7: #{prenorm_forward.1} parent=1 // pred_check_branch
      %14 = sbr.rel (0) target = $region9
    $region8: #{prenorm_forward.1} parent=1 // pred_region
      _
    $region9: #{prenorm_forward.1} parent=1 // pred_fallthru
      _
    // Predicated region
    $region10: #{prenorm_forward.1} parent=1 // pred_check
      _
    $region11: #{prenorm_forward.1} parent=1 // pred_check_branch
      %16 = sbr.rel (0) target = $region13
    $region12: #{prenorm_forward.1} parent=1 // pred_region
      _
    $region13: #{prenorm_forward.1} parent=1 // pred_fallthru
      _
    // Predicated region
    $region14: #{prenorm_forward.1} parent=1 // pred_check
      _
    $region15: #{prenorm_forward.1} parent=1 // pred_check_branch
      %18 = sbr.rel (0) target = $region17
    $region16: #{prenorm_forward.1} parent=1 // pred_region
      _
    $region17: #{prenorm_forward.1} parent=1 // pred_fallthru
      _
    // Predicated region
    $region18: #{prenorm_forward.1} parent=1 // pred_check
      _
    $region19: #{prenorm_forward.1} parent=1 // pred_check_branch
      %20 = sbr.rel (0) target = $region21
    $region20: #{prenorm_forward.1} parent=1 // pred_region
      _
    $region21: #{prenorm_forward.1} parent=1 // pred_fallthru
      _
    %v22 = vld [vmem:[%s0] sm:$0xff]
    %v23 = vld [vmem:[%s0 + $0x8] sm:$0xff]
    %24 = vadd.xlane.f32.xlu0 %v22
    %v25 = vpop.xlane.xlu0 %24
    %26 = vadd.xlane.f32.xlu0 %v23
    %v27 = vpop.xlane.xlu0 %26
    %v28 = vrcp.pop 128.0
    %v29 = vmul.f32 %v25, %v28
    %v30 = vmul.f32 %v27, %v28
    %v31 = vsub.f32 %v22, %v29
    %v32 = vsub.f32 %v23, %v30
    %v33 = vmul.f32 %v31, %v31
    %v34 = vmul.f32 %v32, %v32
    %35 = vadd.xlane.f32.xlu0 %v33
    %v36 = vpop.xlane.xlu0 %35
    %37 = vadd.xlane.f32.xlu0 %v34
    %v38 = vpop.xlane.xlu0 %37
    %v39 = vmul.f32 %v36, %v28
    %v40 = vmul.f32 %v38, %v28
    %v41 = vadd.f32 %v39, 1e-05
    %v42 = vadd.f32 %v40, 1e-05
    %v43 = vrsqrt.pop %v41
    %v44 = vrsqrt.pop %v42
    %v45 = vld [vmem:[%s1] sm:$0x1]
    %v46 = vld [vmem:[%s2] sm:$0x1]
    %v47 = vmul.f32 %v31, %v43
    %v48 = vmul.f32 %v32, %v44
    %v50 = vlaneseq
    %v51 = vshrl.u32 %v50, 7
    %v52 = vsub.s32 0, %v51
    %v53 = vrot.slane %v45, %v52
    %v55 = vmul.f32 %v47, %v53
    %v56 = vmul.f32 %v48, %v53
    %v58 = vlaneseq
    %v59 = vshrl.u32 %v58, 7
    %v60 = vsub.s32 0, %v59
    %v61 = vrot.slane %v46, %v60
    %v63 = vadd.f32 %v55, %v61
    %v64 = vadd.f32 %v56, %v61
    %v65 = vpack.c.bf16 %v64, %v63
    %v66 = vld [vmem:[%s3] sm:$0xff]
    %v67 = vld [vmem:[%s3 + $0x8] sm:$0xff]
    %v68 = vld [vmem:[%s3 + $0x10] sm:$0xff]
    %v69 = vld [vmem:[%s3 + $0x18] sm:$0xff]
    %v70 = vld [vmem:[%s3 + $0x20] sm:$0xff]
    %v71 = vld [vmem:[%s3 + $0x28] sm:$0xff]
    %v72 = vld [vmem:[%s3 + $0x30] sm:$0xff]
    %v73 = vld [vmem:[%s3 + $0x38] sm:$0xff]
    %v74 = vld [vmem:[%s3 + $0x40] sm:$0xff]
    %v75 = vld [vmem:[%s3 + $0x48] sm:$0xff]
    %v76 = vld [vmem:[%s3 + $0x50] sm:$0xff]
    %v77 = vld [vmem:[%s3 + $0x58] sm:$0xff]
    %v78 = vld [vmem:[%s3 + $0x60] sm:$0xff]
    %v79 = vld [vmem:[%s3 + $0x68] sm:$0xff]
    %v80 = vld [vmem:[%s3 + $0x70] sm:$0xff]
    %v81 = vld [vmem:[%s3 + $0x78] sm:$0xff]
    %v82 = vld [vmem:[%s4] sm:$0x3]
    %v84 = vlaneseq
    %v85 = vshrl.u32 %v84, 7
    %v86 = vsub.s32 0, %v85
    %v87 = vrot.slane %v82, %v86
    %v88 = vlaneseq
    %v89 = vshrl.u32 %v88, 7
    %v90 = vsub.s32 1, %v89
    %v91 = vrot.slane %v82, %v90
    %v110 = vunpack.c.l.b16 %v66
    %v111 = vunpack.c.h.b16 %v66
    %v112 = vunpack.c.l.b16 %v67
    %v113 = vunpack.c.h.b16 %v67
    %v114 = vunpack.c.l.b16 %v68
    %v115 = vunpack.c.h.b16 %v68
    %v116 = vunpack.c.l.b16 %v69
    %v117 = vunpack.c.h.b16 %v69
    %v118 = vunpack.c.l.b16 %v70
    %v119 = vunpack.c.h.b16 %v70
    %v120 = vunpack.c.l.b16 %v71
    %v121 = vunpack.c.h.b16 %v71
    %v122 = vunpack.c.l.b16 %v72
    %v123 = vunpack.c.h.b16 %v72
    %v124 = vunpack.c.l.b16 %v73
    %v125 = vunpack.c.h.b16 %v73
    %v126 = vunpack.c.l.b16 %v74
    %v127 = vunpack.c.h.b16 %v74
    %v128 = vunpack.c.l.b16 %v75
    %v129 = vunpack.c.h.b16 %v75
    %v130 = vunpack.c.l.b16 %v76
    %v131 = vunpack.c.h.b16 %v76
    %v132 = vunpack.c.l.b16 %v77
    %v133 = vunpack.c.h.b16 %v77
    %v134 = vunpack.c.l.b16 %v78
    %v135 = vunpack.c.h.b16 %v78
    %v136 = vunpack.c.l.b16 %v79
    %v137 = vunpack.c.h.b16 %v79
    %v138 = vunpack.c.l.b16 %v80
    %v139 = vunpack.c.h.b16 %v80
    %v140 = vunpack.c.l.b16 %v81
    %v141 = vunpack.c.h.b16 %v81
    %v142 = vpack.c.b16 %v112, %v110
    %v143 = vpack.c.b16 %v113, %v111
    %v144 = vpack.c.b16 %v116, %v114
    %v145 = vpack.c.b16 %v117, %v115
    %v146 = vpack.c.b16 %v120, %v118
    %v147 = vpack.c.b16 %v121, %v119
    %v148 = vpack.c.b16 %v124, %v122
    %v149 = vpack.c.b16 %v125, %v123
    %v150 = vpack.c.b16 %v128, %v126
    %v151 = vpack.c.b16 %v129, %v127
    %v152 = vpack.c.b16 %v132, %v130
    %v153 = vpack.c.b16 %v133, %v131
    %v154 = vpack.c.b16 %v136, %v134
    %v155 = vpack.c.b16 %v137, %v135
    %v156 = vpack.c.b16 %v140, %v138
    %v157 = vpack.c.b16 %v141, %v139
    %174 = vmatprep.subr.bf16.mxu0 %v143
    %175 = vmatpush1.bf16.msra.mxu0 %v142
    %176 = vmatprep.subr.bf16.mxu0 %v145
    %177 = vmatpush1.bf16.msra.mxu0 %v144
    %178 = vmatprep.subr.bf16.mxu0 %v147
    %179 = vmatpush1.bf16.msra.mxu0 %v146
    %180 = vmatprep.subr.bf16.mxu0 %v149
    %181 = vmatpush1.bf16.msra.mxu0 %v148
    %182 = vmatprep.subr.bf16.mxu0 %v151
    %183 = vmatpush1.bf16.msra.mxu0 %v150
    %184 = vmatprep.subr.bf16.mxu0 %v153
    %185 = vmatpush1.bf16.msra.mxu0 %v152
    %186 = vmatprep.subr.bf16.mxu0 %v155
    %187 = vmatpush1.bf16.msra.mxu0 %v154
    %188 = vmatprep.subr.bf16.mxu0 %v157
    %189 = vmatpush1.bf16.msra.mxu0 %v156
    %190 = vmatprep.subr.bf16.mxu0 0
    %191 = vmatpush1.bf16.msra.mxu0 0
    %192 = vmatprep.subr.bf16.mxu0 0
    %193 = vmatpush1.bf16.msra.mxu0 0
    %194 = vmatprep.subr.bf16.mxu0 0
    %195 = vmatpush1.bf16.msra.mxu0 0
    %196 = vmatprep.subr.bf16.mxu0 0
    %197 = vmatpush1.bf16.msra.mxu0 0
    %198 = vmatprep.subr.bf16.mxu0 0
    %199 = vmatpush1.bf16.msra.mxu0 0
    %200 = vmatprep.subr.bf16.mxu0 0
    %201 = vmatpush1.bf16.msra.mxu0 0
    %202 = vmatprep.subr.bf16.mxu0 0
    %203 = vmatpush1.bf16.msra.mxu0 0
    %204 = vmatprep.subr.bf16.mxu0 0
    %205 = vmatpush1.bf16.msra.mxu0 0
    %206 = vmatprep.mubr.bf16.mxu0 0
    %207 = vmatmul.mubr.bf16.gmra.mrb[0].mxu0 %v65
    %v208 = vpop.f32.mrb[0].mxu0
    %v209 = vadd.f32 %v87, %v208
    %v210 = vpop.f32.mrb[0].mxu0
    %v211 = vadd.f32 %v91, %v210
    %v212 = vpop.f32.mrb[0].mxu0
    %v213 = vadd.f32 %v87, %v212
    %v214 = vpop.f32.mrb[0].mxu0
    %v215 = vadd.f32 %v91, %v214
    %216 = vdwg.mxu0
    %217 = vst [vmem:[#allocation2] sm:$0xff] %v209
    %218 = vst [vmem:[#allocation2 + $0x8] sm:$0xff] %v211
    %219 = vst [vmem:[#allocation2 + $0x10] sm:$0xff] %v213
    %220 = vst [vmem:[#allocation2 + $0x18] sm:$0xff] %v215
    // Predicated region
    $region22: #{prenorm_forward.1} parent=1 // pred_check
      _
    $region23: #{prenorm_forward.1} parent=1 // pred_check_branch
      %222 = sbr.rel (0) target = $region25
    $region24: #{prenorm_forward.1} parent=1 // pred_region
      %s224 = ssub.s32 512, 512
      %225 = vsyncadd [#allocation3], %s224
      %s226 = sshll.u32 [#allocation2], 4
      %s227 = int_to_ptr.vmem [resolvable:$true] %s226
      %232 = dma.vmem_to_hbm [thread:$0]  %s227, 512, %s5, [#allocation3], 256, 256, 16
    $region25: #{prenorm_forward.1} parent=1 // pred_fallthru
      _
    // Predicated region
    $region26: #{prenorm_forward.1} parent=1 // pred_check
      _
    $region27: #{prenorm_forward.1} parent=1 // pred_check_branch
      %234 = sbr.rel (0) target = $region29
    $region28: #{prenorm_forward.1} parent=1 // pred_region
      %235 = dma.done [#allocation3], 512
    $region29: #{prenorm_forward.1} parent=1 // pred_fallthru
      _
    %236 = vsyncpa [#allocation3], 1

</llo_original>
